<compile_context>
chip_gen: v7x
topology: tpu7x:2x2x1
jax: 0.10.0
libtpu: 0.0.40
codegen_flags: <defaults>
</compile_context>

<pallas_src>
import functools

import jax
import jax.numpy as jnp
import numpy as np
from jax.experimental import pallas as pl
from jax.experimental.pallas import tpu as pltpu


# ------------------------------ Pallas kernel -------------------------------


def _conv3x3_cp(x_cp, w_col_ref, bias_ref, masks, W, NHW):
    """3x3 conv (stride 1, pad 1) + bias + ReLU in channels-by-pixels layout.

    x_cp:      (Cin, NHW) f32, NB images side by side on the lane axis
    w_col_ref: (Cout, 9*Cin) bf16 im2col weights (BN scale folded),
               tap-major / cin-fastest
    bias_ref:  (Cout, 1) f32 folded BN shift
    masks:     (9, NHW) f32 0/1 per-tap boundary masks (tiled per image)
    Returns (Cout, NHW) f32.
    """
    cols = []
    i = 0
    for dh in (-1, 0, 1):
        for dw in (-1, 0, 1):
            s = dh * W + dw
            # shifted[c, p] = x[c, p + s]; out-of-bounds / cross-image sources
            # are zeroed by the per-image boundary mask.
            shifted = x_cp if s == 0 else pltpu.roll(x_cp, shift=(-s) % NHW, axis=1)
            cols.append(shifted * masks[i:i + 1, :])
            i += 1
    x_col = jnp.concatenate(cols, axis=0).astype(jnp.bfloat16)   # (9*Cin, NHW)
    y = jnp.dot(w_col_ref[...], x_col, preferred_element_type=jnp.float32)
    return jnp.maximum(y + bias_ref[...], 0.0)


def _dense_layer_kernel(x_ref, masks_ref, wa_ref, ba_ref, wb_ref, bb_ref,
                        w2c_ref, b2c_ref, o_ref, *, W, HW, inter, growth, cin2c):
    """Fused _DenseLayer forward for a chunk of NB images, (C, NB*HW) layout.

    x_ref:   (NB, Cin, HW)
    masks_ref: (9, NB*HW) f32 0/1 boundary masks
    wa_ref:  (2*inter, Cin) bf16     merged branch1a+branch2a 1x1 weights
    ba_ref:  (2*inter, 1) f32        merged folded BN shifts
    wb_ref:  (2*growth, 9*2*inter)   block-diagonal merged branch1b/branch2b
    bb_ref:  (2*growth, 1)
    w2c_ref: (growth, 9*cin2c)       branch2c (input channels padded to cin2c)
    b2c_ref: (growth, 1)
    o_ref:   (NB, Cin + 2*growth, HW) = cat([x, branch1, branch2], channel ax)
    """
    NB, Cin, _ = x_ref.shape
    NHW = NB * HW

    # Pass-through channels of torch.cat([x, ...]): aligned sub-stores, so x's
    # vregs die right after the 1x1 matmul below (no full-width concat copy).
    xs = [x_ref[n] for n in range(NB)]
    for n in range(NB):
        o_ref[n, 0:Cin, :] = xs[n]

    # Fold the batch onto the lane axis: (Cin, NB*HW) (aligned vreg moves).
    x_wide = jnp.concatenate(xs, axis=1) if NB > 1 else xs[0]

    masks = masks_ref[...]                                   # (9, NHW) f32

    # Merged branch1a + branch2a 1x1 conv: bf16 MXU operands, f32 epilogue.
    a = jnp.dot(wa_ref[...], x_wide.astype(jnp.bfloat16),
                preferred_element_type=jnp.float32)
    a = jnp.maximum(a + ba_ref[...], 0.0)                    # (2*inter, NHW)

    # Block-diagonal merged branch1b + branch2b over the full `a`.
    b12 = _conv3x3_cp(a, wb_ref, bb_ref, masks, W, NHW)      # (2*growth, NHW)

    b1 = b12[0:growth, :]                                    # branch1 output
    b2 = b12[growth:2 * growth, :]                           # branch2b output
    if cin2c > growth:                                       # sublane-align 2c input
        b2 = jnp.concatenate(
            [b2, jnp.zeros((cin2c - growth, NHW), jnp.float32)], axis=0)
    b2 = _conv3x3_cp(b2, w2c_ref, b2c_ref, masks, W, NHW)    # (growth, NHW)

    # New channels: one aligned sub-store per image (Cin, 2*growth mult. of 8).
    new = jnp.concatenate([b1, b2], axis=0).astype(o_ref.dtype)
    for n in range(NB):
        o_ref[n, Cin:Cin + 2 * growth, :] = new[:, n * HW:(n + 1) * HW]


# --------------------------------- wrapper -----------------------------------


def _fold_bn(w_oihw, gamma, beta, mean, var, eps=1e-5):
    """Fold eval-mode BN into the (bias-free) conv.  Returns OIHW weight + shift."""
    scale = gamma / jnp.sqrt(var + eps)
    shift = beta - mean * scale
    w = w_oihw * scale[:, None, None, None]
    return w.astype(jnp.float32), shift.reshape(-1, 1).astype(jnp.float32)


def _im2col(w_oihw):
    """(Cout, Cin, KH, KW) -> (Cout, KH*KW*Cin), tap-major / cin-fastest."""
    Cout, Cin, KH, KW = w_oihw.shape
    return jnp.transpose(w_oihw, (0, 2, 3, 1)).reshape(Cout, KH * KW * Cin)


def _make_tap_masks(H, W, NB):
    """(9, NB*H*W) f32 0/1 boundary masks, tiled per image (p % HW)."""
    HW = H * W
    p = np.arange(NB * HW)
    q = p % HW
    h, w = q // W, q % W
    masks = []
    for dh in (-1, 0, 1):
        for dw in (-1, 0, 1):
            m = (h + dh >= 0) & (h + dh < H) & (w + dw >= 0) & (w + dw < W)
            masks.append(m.astype(np.float32))
    return jnp.asarray(np.stack(masks, axis=0))


def dense_layer_forward(x_nchw, params, *, batch_chunk=None):
    """_DenseLayer.forward.  Input/Output NCHW; one pallas_call for the layer."""
    N, Cin, H, W = x_nchw.shape
    HW = H * W

    w1a, s1a = _fold_bn(*params["branch1a"])
    w2a, s2a = _fold_bn(*params["branch2a"])
    w1b, s1b = _fold_bn(*params["branch1b"])
    w2b, s2b = _fold_bn(*params["branch2b"])
    w2c, s2c = _fold_bn(*params["branch2c"])

    inter = w1a.shape[0]
    growth = w1b.shape[0]
    Ctot = Cin + 2 * growth

    # Merge the two 1x1 convs (same input x) into a single matmul.
    wa = jnp.concatenate([w1a, w2a], axis=0).reshape(2 * inter, Cin)
    ba = jnp.concatenate([s1a, s2a], axis=0)                 # (2*inter, 1)

    # Block-diagonal merge of the two parallel 3x3 convs (branch1b, branch2b).
    wb = jnp.zeros((2 * growth, 2 * inter, 3, 3), jnp.float32)
    wb = wb.at[:growth, :inter].set(w1b).at[growth:, inter:].set(w2b)
    wb_col = _im2col(wb)                                     # (2*growth, 9*2*inter)
    bb = jnp.concatenate([s1b, s2b], axis=0)                 # (2*growth, 1)

    # branch2c with its input channels zero-padded to a sublane multiple.
    cin2c = max(8, ((growth + 7) // 8) * 8)
    w2c_pad = jnp.zeros((growth, cin2c, 3, 3), jnp.float32).at[:, :growth].set(w2c)
    w2c_col = _im2col(w2c_pad)                               # (growth, 9*cin2c)

    # bf16 weights at the MXU boundary; f32 accumulate + f32 bias/ReLU epilogue.
    wa = wa.astype(jnp.bfloat16)
    wb_col = wb_col.astype(jnp.bfloat16)
    w2c_col = w2c_col.astype(jnp.bfloat16)

    NB = N if batch_chunk is None else batch_chunk
    assert N % NB == 0, "batch_chunk must divide N"
    masks = _make_tap_masks(H, W, NB)                        # (9, NB*HW)

    x_cp = x_nchw.reshape(N, Cin, HW)                        # free reshape (NCHW)

    kernel = functools.partial(_dense_layer_kernel, W=W, HW=HW,
                               inter=inter, growth=growth, cin2c=cin2c)

    def full(arr):  # whole-array, grid-invariant operand
        return pl.BlockSpec(arr.shape, lambda i, a=arr: (0,) * a.ndim)

    out = pl.pallas_call(
        kernel,
        out_shape=jax.ShapeDtypeStruct((N, Ctot, HW), x_nchw.dtype),
        grid=(N // NB,),
        in_specs=[
            pl.BlockSpec((NB, Cin, HW), lambda i: (i, 0, 0)),
            full(masks),
            full(wa), full(ba),
            full(wb_col), full(bb),
            full(w2c_col), full(s2c),
        ],
        out_specs=pl.BlockSpec((NB, Ctot, HW), lambda i: (i, 0, 0)),
        compiler_params=pltpu.CompilerParams(dimension_semantics=("parallel",)),
    )(x_cp, masks, wa, ba, wb_col, bb, w2c_col, s2c)

    return out.reshape(N, Ctot, H, W)


# ----------------------------- parameter setup -------------------------------


def _basic_conv_params(key, cin, cout, k):
    kw_, kb, km, kv, kg = jax.random.split(key, 5)
    fan_in = cin * k * k
    w = jax.random.normal(kw_, (cout, cin, k, k), jnp.float32) * (1.0 / np.sqrt(fan_in))
    gamma = jax.random.uniform(kg, (cout,), jnp.float32, 0.5, 1.5)
    beta = jax.random.normal(kb, (cout,), jnp.float32) * 0.1
    mean = jax.random.normal(km, (cout,), jnp.float32) * 0.1
    var = jax.random.uniform(kv, (cout,), jnp.float32, 0.5, 1.5)
    return (w, gamma, beta, mean, var)


def make_dense_layer_params(key, num_input_features, growth_rate, bottleneck_width):
    # Mirror the PyTorch __init__ arithmetic exactly.
    growth_rate = int(growth_rate / 2)
    inter_channel = int(growth_rate * bottleneck_width / 4) * 4
    if inter_channel > num_input_features / 2:
        inter_channel = int(num_input_features / 8) * 4
        print("adjust inter_channel to ", inter_channel)
    keys = jax.random.split(key, 5)
    return {
        "branch1a": _basic_conv_params(keys[0], num_input_features, inter_channel, 1),
        "branch1b": _basic_conv_params(keys[1], inter_channel, growth_rate, 3),
        "branch2a": _basic_conv_params(keys[2], num_input_features, inter_channel, 1),
        "branch2b": _basic_conv_params(keys[3], inter_channel, growth_rate, 3),
        "branch2c": _basic_conv_params(keys[4], growth_rate, growth_rate, 3),
    }


# --------------------------- pure-JAX reference -------------------------------


def _ref_conv_bn_relu(x, w, gamma, beta, mean, var, padding, eps=1e-5):
    y = jax.lax.conv_general_dilated(
        x, w, window_strides=(1, 1),
        padding=[(padding, padding), (padding, padding)],
        dimension_numbers=("NCHW", "OIHW", "NCHW"))
    scale = (gamma / jnp.sqrt(var + eps)).reshape(1, -1, 1, 1)
    shift = (beta - mean * gamma / jnp.sqrt(var + eps)).reshape(1, -1, 1, 1)
    return jnp.maximum(y * scale + shift, 0.0)


def _ref_forward(x, params):
    b1 = _ref_conv_bn_relu(x, *params["branch1a"], padding=0)
    b1 = _ref_conv_bn_relu(b1, *params["branch1b"], padding=1)
    b2 = _ref_conv_bn_relu(x, *params["branch2a"], padding=0)
    b2 = _ref_conv_bn_relu(b2, *params["branch2b"], padding=1)
    b2 = _ref_conv_bn_relu(b2, *params["branch2c"], padding=1)
    return jnp.concatenate([x, b1, b2], axis=1)


# ----------------------------------- main -------------------------------------

if __name__ == "__main__":
    # Shapes consistent with the module:
    #   num_input_features=32, growth_rate=8, bottleneck_width=2
    #   -> growth_rate//2 = 4, inter_channel = 8, output channels = 32+4+4 = 40
    N, C, H, W = 2, 32, 16, 16
    key = jax.random.PRNGKey(0)
    kx, kp = jax.random.split(key)

    x = jax.random.normal(kx, (N, C, H, W), jnp.float32)
    params = make_dense_layer_params(
        kp, num_input_features=C, growth_rate=8, bottleneck_width=2
    )

    out = jax.block_until_ready(dense_layer_forward(x, params))
    ref = jax.block_until_ready(_ref_forward(x, params))

    assert out.shape == (N, C + 4 + 4, H, W), out.shape
    # Pass-through channels (torch.cat's first block) must be bit-exact.
    np.testing.assert_array_equal(np.asarray(out[:, :C]), np.asarray(x))
    # New channels: bf16 MXU operands (f32 accumulate) -> loosened tolerance.
    np.testing.assert_allclose(np.asarray(out), np.asarray(ref), rtol=5e-2, atol=1e-1)

    print("KERNEL_OK")
</pallas_src>

<mosaic_0001>
module attributes {stable_mosaic.version = 11 : i64} {
  func.func @_dense_layer_kernel(%arg0: i32, %arg1: memref<2x32x256xf32, #tpu.memory_space<vmem>>, %arg2: memref<9x512xf32, #tpu.memory_space<vmem>>, %arg3: memref<16x32xbf16, #tpu.memory_space<vmem>>, %arg4: memref<16x1xf32, #tpu.memory_space<vmem>>, %arg5: memref<8x144xbf16, #tpu.memory_space<vmem>>, %arg6: memref<8x1xf32, #tpu.memory_space<vmem>>, %arg7: memref<4x72xbf16, #tpu.memory_space<vmem>>, %arg8: memref<4x1xf32, #tpu.memory_space<vmem>>, %arg9: memref<2x40x256xf32, #tpu.memory_space<vmem>>) attributes {dimension_semantics = [#tpu.dimension_semantics<parallel>], iteration_bounds = array<i64: 1>, scalar_prefetch = 0 : i64, scratch_operands = 0 : i64, tpu.core_type = #tpu.core_type<tc>, window_params = [{transform_indices = @transform_0, window_bounds = array<i64: 2, 32, 256>}, {pipeline_mode = #tpu.pipeline_mode<synchronous>, transform_indices = @transform_1, window_bounds = array<i64: 9, 512>}, {pipeline_mode = #tpu.pipeline_mode<synchronous>, transform_indices = @transform_2, window_bounds = array<i64: 16, 32>}, {pipeline_mode = #tpu.pipeline_mode<synchronous>, transform_indices = @transform_3, window_bounds = array<i64: 16, 1>}, {pipeline_mode = #tpu.pipeline_mode<synchronous>, transform_indices = @transform_4, window_bounds = array<i64: 8, 144>}, {pipeline_mode = #tpu.pipeline_mode<synchronous>, transform_indices = @transform_5, window_bounds = array<i64: 8, 1>}, {pipeline_mode = #tpu.pipeline_mode<synchronous>, transform_indices = @transform_6, window_bounds = array<i64: 4, 72>}, {pipeline_mode = #tpu.pipeline_mode<synchronous>, transform_indices = @transform_7, window_bounds = array<i64: 4, 1>}, {transform_indices = @transform_8, window_bounds = array<i64: 2, 40, 256>}]} {
    %c0 = arith.constant 0 : index
    %c0_0 = arith.constant 0 : index
    %c0_1 = arith.constant 0 : index
    %0 = vector.load %arg1[%c0, %c0_0, %c0_1] : memref<2x32x256xf32, #tpu.memory_space<vmem>>, vector<1x32x256xf32>
    %1 = vector.shape_cast %0 : vector<1x32x256xf32> to vector<32x256xf32>
    %c1 = arith.constant 1 : index
    %c0_2 = arith.constant 0 : index
    %c0_3 = arith.constant 0 : index
    %2 = vector.load %arg1[%c1, %c0_2, %c0_3] : memref<2x32x256xf32, #tpu.memory_space<vmem>>, vector<1x32x256xf32>
    %3 = vector.shape_cast %2 : vector<1x32x256xf32> to vector<32x256xf32>
    %c0_4 = arith.constant 0 : index
    %c0_5 = arith.constant 0 : index
    %c0_6 = arith.constant 0 : index
    %4 = vector.load %arg9[%c0_4, %c0_5, %c0_6] : memref<2x40x256xf32, #tpu.memory_space<vmem>>, vector<1x32x256xf32>
    %5 = vector.shape_cast %4 : vector<1x32x256xf32> to vector<32x256xf32>
    %6 = vector.shape_cast %1 : vector<32x256xf32> to vector<1x32x256xf32>
    tpu.vector_store %arg9[%c0_4, %c0_5, %c0_6], %6 {strides = array<i32>} : memref<2x40x256xf32, #tpu.memory_space<vmem>>, vector<1x32x256xf32>,
    %c1_7 = arith.constant 1 : index
    %c0_8 = arith.constant 0 : index
    %c0_9 = arith.constant 0 : index
    %7 = vector.load %arg9[%c1_7, %c0_8, %c0_9] : memref<2x40x256xf32, #tpu.memory_space<vmem>>, vector<1x32x256xf32>
    %8 = vector.shape_cast %7 : vector<1x32x256xf32> to vector<32x256xf32>
    %9 = vector.shape_cast %3 : vector<32x256xf32> to vector<1x32x256xf32>
    tpu.vector_store %arg9[%c1_7, %c0_8, %c0_9], %9 {strides = array<i32>} : memref<2x40x256xf32, #tpu.memory_space<vmem>>, vector<1x32x256xf32>,
    %10 = tpu.concatenate %1, %3 in 1 : vector<32x256xf32>, vector<32x256xf32> -> vector<32x512xf32>
    %c0_10 = arith.constant 0 : index
    %c0_11 = arith.constant 0 : index
    %11 = vector.load %arg2[%c0_10, %c0_11] : memref<9x512xf32, #tpu.memory_space<vmem>>, vector<9x512xf32>
    %c0_12 = arith.constant 0 : index
    %c0_13 = arith.constant 0 : index
    %12 = vector.load %arg3[%c0_12, %c0_13] : memref<16x32xbf16, #tpu.memory_space<vmem>>, vector<16x32xbf16>
    %13 = arith.truncf %10 : vector<32x512xf32> to vector<32x512xbf16>
    %cst = arith.constant dense<0.000000e+00> : vector<16x512xf32>
    %14 = tpu.matmul %12, %13, %cst {dimension_numbers = #tpu.dot_dimension_numbers<[1], [0], [0], [1], [0, 0, 1, 1], [], []>} : vector<16x32xbf16>, vector<32x512xbf16>, vector<16x512xf32> -> vector<16x512xf32>
    %c0_14 = arith.constant 0 : index
    %c0_15 = arith.constant 0 : index
    %15 = vector.load %arg4[%c0_14, %c0_15] : memref<16x1xf32, #tpu.memory_space<vmem>>, vector<16x1xf32>
    %16 = vector.broadcast %15 : vector<16x1xf32> to vector<16x512xf32>
    %17 = arith.addf %14, %16 : vector<16x512xf32>
    %cst_16 = arith.constant 0.000000e+00 : f32
    %18 = vector.broadcast %cst_16 : f32 to vector<16x512xf32>
    %19 = arith.maximumf %17, %18 : vector<16x512xf32>
    %c17_i32 = arith.constant 17 : i32
    %20 = tpu.dynamic_rotate %19 by %c17_i32 dim 1 : vector<16x512xf32>, i32 -> vector<16x512xf32>
    %21 = vector.extract_strided_slice %11 {offsets = [0, 0], sizes = [1, 512], strides = [1, 1]} : vector<9x512xf32> to vector<1x512xf32>
    %22 = vector.broadcast %21 : vector<1x512xf32> to vector<16x512xf32>
    %23 = arith.mulf %20, %22 : vector<16x512xf32>
    %c16_i32 = arith.constant 16 : i32
    %24 = tpu.dynamic_rotate %19 by %c16_i32 dim 1 : vector<16x512xf32>, i32 -> vector<16x512xf32>
    %25 = vector.extract_strided_slice %11 {offsets = [1, 0], sizes = [1, 512], strides = [1, 1]} : vector<9x512xf32> to vector<1x512xf32>
    %26 = vector.broadcast %25 : vector<1x512xf32> to vector<16x512xf32>
    %27 = arith.mulf %24, %26 : vector<16x512xf32>
    %c15_i32 = arith.constant 15 : i32
    %28 = tpu.dynamic_rotate %19 by %c15_i32 dim 1 : vector<16x512xf32>, i32 -> vector<16x512xf32>
    %29 = vector.extract_strided_slice %11 {offsets = [2, 0], sizes = [1, 512], strides = [1, 1]} : vector<9x512xf32> to vector<1x512xf32>
    %30 = vector.broadcast %29 : vector<1x512xf32> to vector<16x512xf32>
    %31 = arith.mulf %28, %30 : vector<16x512xf32>
    %c1_i32 = arith.constant 1 : i32
    %32 = tpu.dynamic_rotate %19 by %c1_i32 dim 1 : vector<16x512xf32>, i32 -> vector<16x512xf32>
    %33 = vector.extract_strided_slice %11 {offsets = [3, 0], sizes = [1, 512], strides = [1, 1]} : vector<9x512xf32> to vector<1x512xf32>
    %34 = vector.broadcast %33 : vector<1x512xf32> to vector<16x512xf32>
    %35 = arith.mulf %32, %34 : vector<16x512xf32>
    %36 = vector.extract_strided_slice %11 {offsets = [4, 0], sizes = [1, 512], strides = [1, 1]} : vector<9x512xf32> to vector<1x512xf32>
    %37 = vector.broadcast %36 : vector<1x512xf32> to vector<16x512xf32>
    %38 = arith.mulf %19, %37 : vector<16x512xf32>
    %c511_i32 = arith.constant 511 : i32
    %39 = tpu.dynamic_rotate %19 by %c511_i32 dim 1 : vector<16x512xf32>, i32 -> vector<16x512xf32>
    %40 = vector.extract_strided_slice %11 {offsets = [5, 0], sizes = [1, 512], strides = [1, 1]} : vector<9x512xf32> to vector<1x512xf32>
    %41 = vector.broadcast %40 : vector<1x512xf32> to vector<16x512xf32>
    %42 = arith.mulf %39, %41 : vector<16x512xf32>
    %c497_i32 = arith.constant 497 : i32
    %43 = tpu.dynamic_rotate %19 by %c497_i32 dim 1 : vector<16x512xf32>, i32 -> vector<16x512xf32>
    %44 = vector.extract_strided_slice %11 {offsets = [6, 0], sizes = [1, 512], strides = [1, 1]} : vector<9x512xf32> to vector<1x512xf32>
    %45 = vector.broadcast %44 : vector<1x512xf32> to vector<16x512xf32>
    %46 = arith.mulf %43, %45 : vector<16x512xf32>
    %c496_i32 = arith.constant 496 : i32
    %47 = tpu.dynamic_rotate %19 by %c496_i32 dim 1 : vector<16x512xf32>, i32 -> vector<16x512xf32>
    %48 = vector.extract_strided_slice %11 {offsets = [7, 0], sizes = [1, 512], strides = [1, 1]} : vector<9x512xf32> to vector<1x512xf32>
    %49 = vector.broadcast %48 : vector<1x512xf32> to vector<16x512xf32>
    %50 = arith.mulf %47, %49 : vector<16x512xf32>
    %c495_i32 = arith.constant 495 : i32
    %51 = tpu.dynamic_rotate %19 by %c495_i32 dim 1 : vector<16x512xf32>, i32 -> vector<16x512xf32>
    %52 = vector.extract_strided_slice %11 {offsets = [8, 0], sizes = [1, 512], strides = [1, 1]} : vector<9x512xf32> to vector<1x512xf32>
    %53 = vector.broadcast %52 : vector<1x512xf32> to vector<16x512xf32>
    %54 = arith.mulf %51, %53 : vector<16x512xf32>
    %55 = tpu.concatenate %23, %27, %31, %35, %38, %42, %46, %50, %54 in 0 : vector<16x512xf32>, vector<16x512xf32>, vector<16x512xf32>, vector<16x512xf32>, vector<16x512xf32>, vector<16x512xf32>, vector<16x512xf32>, vector<16x512xf32>, vector<16x512xf32> -> vector<144x512xf32>
    %56 = arith.truncf %55 : vector<144x512xf32> to vector<144x512xbf16>
    %c0_17 = arith.constant 0 : index
    %c0_18 = arith.constant 0 : index
    %57 = vector.load %arg5[%c0_17, %c0_18] : memref<8x144xbf16, #tpu.memory_space<vmem>>, vector<8x144xbf16>
    %cst_19 = arith.constant dense<0.000000e+00> : vector<8x512xf32>
    %58 = tpu.matmul %57, %56, %cst_19 {dimension_numbers = #tpu.dot_dimension_numbers<[1], [0], [0], [1], [0, 0, 1, 1], [], []>} : vector<8x144xbf16>, vector<144x512xbf16>, vector<8x512xf32> -> vector<8x512xf32>
    %c0_20 = arith.constant 0 : index
    %c0_21 = arith.constant 0 : index
    %59 = vector.load %arg6[%c0_20, %c0_21] : memref<8x1xf32, #tpu.memory_space<vmem>>, vector<8x1xf32>
    %60 = vector.broadcast %59 : vector<8x1xf32> to vector<8x512xf32>
    %61 = arith.addf %58, %60 : vector<8x512xf32>
    %cst_22 = arith.constant 0.000000e+00 : f32
    %62 = vector.broadcast %cst_22 : f32 to vector<8x512xf32>
    %63 = arith.maximumf %61, %62 : vector<8x512xf32>
    %64 = vector.extract_strided_slice %63 {offsets = [0, 0], sizes = [4, 512], strides = [1, 1]} : vector<8x512xf32> to vector<4x512xf32>
    %65 = vector.extract_strided_slice %63 {offsets = [4, 0], sizes = [4, 512], strides = [1, 1]} : vector<8x512xf32> to vector<4x512xf32>
    %cst_23 = arith.constant 0.000000e+00 : f32
    %66 = vector.broadcast %cst_23 : f32 to vector<4x512xf32>
    %67 = tpu.concatenate %65, %66 in 0 : vector<4x512xf32>, vector<4x512xf32> -> vector<8x512xf32>
    %c17_i32_24 = arith.constant 17 : i32
    %68 = tpu.dynamic_rotate %67 by %c17_i32_24 dim 1 : vector<8x512xf32>, i32 -> vector<8x512xf32>
    %69 = vector.extract_strided_slice %11 {offsets = [0, 0], sizes = [1, 512], strides = [1, 1]} : vector<9x512xf32> to vector<1x512xf32>
    %70 = vector.broadcast %69 : vector<1x512xf32> to vector<8x512xf32>
    %71 = arith.mulf %68, %70 : vector<8x512xf32>
    %c16_i32_25 = arith.constant 16 : i32
    %72 = tpu.dynamic_rotate %67 by %c16_i32_25 dim 1 : vector<8x512xf32>, i32 -> vector<8x512xf32>
    %73 = vector.extract_strided_slice %11 {offsets = [1, 0], sizes = [1, 512], strides = [1, 1]} : vector<9x512xf32> to vector<1x512xf32>
    %74 = vector.broadcast %73 : vector<1x512xf32> to vector<8x512xf32>
    %75 = arith.mulf %72, %74 : vector<8x512xf32>
    %c15_i32_26 = arith.constant 15 : i32
    %76 = tpu.dynamic_rotate %67 by %c15_i32_26 dim 1 : vector<8x512xf32>, i32 -> vector<8x512xf32>
    %77 = vector.extract_strided_slice %11 {offsets = [2, 0], sizes = [1, 512], strides = [1, 1]} : vector<9x512xf32> to vector<1x512xf32>
    %78 = vector.broadcast %77 : vector<1x512xf32> to vector<8x512xf32>
    %79 = arith.mulf %76, %78 : vector<8x512xf32>
    %c1_i32_27 = arith.constant 1 : i32
    %80 = tpu.dynamic_rotate %67 by %c1_i32_27 dim 1 : vector<8x512xf32>, i32 -> vector<8x512xf32>
    %81 = vector.extract_strided_slice %11 {offsets = [3, 0], sizes = [1, 512], strides = [1, 1]} : vector<9x512xf32> to vector<1x512xf32>
    %82 = vector.broadcast %81 : vector<1x512xf32> to vector<8x512xf32>
    %83 = arith.mulf %80, %82 : vector<8x512xf32>
    %84 = vector.extract_strided_slice %11 {offsets = [4, 0], sizes = [1, 512], strides = [1, 1]} : vector<9x512xf32> to vector<1x512xf32>
    %85 = vector.broadcast %84 : vector<1x512xf32> to vector<8x512xf32>
    %86 = arith.mulf %67, %85 : vector<8x512xf32>
    %c511_i32_28 = arith.constant 511 : i32
    %87 = tpu.dynamic_rotate %67 by %c511_i32_28 dim 1 : vector<8x512xf32>, i32 -> vector<8x512xf32>
    %88 = vector.extract_strided_slice %11 {offsets = [5, 0], sizes = [1, 512], strides = [1, 1]} : vector<9x512xf32> to vector<1x512xf32>
    %89 = vector.broadcast %88 : vector<1x512xf32> to vector<8x512xf32>
    %90 = arith.mulf %87, %89 : vector<8x512xf32>
    %c497_i32_29 = arith.constant 497 : i32
    %91 = tpu.dynamic_rotate %67 by %c497_i32_29 dim 1 : vector<8x512xf32>, i32 -> vector<8x512xf32>
    %92 = vector.extract_strided_slice %11 {offsets = [6, 0], sizes = [1, 512], strides = [1, 1]} : vector<9x512xf32> to vector<1x512xf32>
    %93 = vector.broadcast %92 : vector<1x512xf32> to vector<8x512xf32>
    %94 = arith.mulf %91, %93 : vector<8x512xf32>
    %c496_i32_30 = arith.constant 496 : i32
    %95 = tpu.dynamic_rotate %67 by %c496_i32_30 dim 1 : vector<8x512xf32>, i32 -> vector<8x512xf32>
    %96 = vector.extract_strided_slice %11 {offsets = [7, 0], sizes = [1, 512], strides = [1, 1]} : vector<9x512xf32> to vector<1x512xf32>
    %97 = vector.broadcast %96 : vector<1x512xf32> to vector<8x512xf32>
    %98 = arith.mulf %95, %97 : vector<8x512xf32>
    %c495_i32_31 = arith.constant 495 : i32
    %99 = tpu.dynamic_rotate %67 by %c495_i32_31 dim 1 : vector<8x512xf32>, i32 -> vector<8x512xf32>
    %100 = vector.extract_strided_slice %11 {offsets = [8, 0], sizes = [1, 512], strides = [1, 1]} : vector<9x512xf32> to vector<1x512xf32>
    %101 = vector.broadcast %100 : vector<1x512xf32> to vector<8x512xf32>
    %102 = arith.mulf %99, %101 : vector<8x512xf32>
    %103 = tpu.concatenate %71, %75, %79, %83, %86, %90, %94, %98, %102 in 0 : vector<8x512xf32>, vector<8x512xf32>, vector<8x512xf32>, vector<8x512xf32>, vector<8x512xf32>, vector<8x512xf32>, vector<8x512xf32>, vector<8x512xf32>, vector<8x512xf32> -> vector<72x512xf32>
    %104 = arith.truncf %103 : vector<72x512xf32> to vector<72x512xbf16>
    %c0_32 = arith.constant 0 : index
    %c0_33 = arith.constant 0 : index
    %105 = vector.load %arg7[%c0_32, %c0_33] : memref<4x72xbf16, #tpu.memory_space<vmem>>, vector<4x72xbf16>
    %cst_34 = arith.constant dense<0.000000e+00> : vector<4x512xf32>
    %106 = tpu.matmul %105, %104, %cst_34 {dimension_numbers = #tpu.dot_dimension_numbers<[1], [0], [0], [1], [0, 0, 1, 1], [], []>} : vector<4x72xbf16>, vector<72x512xbf16>, vector<4x512xf32> -> vector<4x512xf32>
    %c0_35 = arith.constant 0 : index
    %c0_36 = arith.constant 0 : index
    %107 = vector.load %arg8[%c0_35, %c0_36] : memref<4x1xf32, #tpu.memory_space<vmem>>, vector<4x1xf32>
    %108 = vector.broadcast %107 : vector<4x1xf32> to vector<4x512xf32>
    %109 = arith.addf %106, %108 : vector<4x512xf32>
    %cst_37 = arith.constant 0.000000e+00 : f32
    %110 = vector.broadcast %cst_37 : f32 to vector<4x512xf32>
    %111 = arith.maximumf %109, %110 : vector<4x512xf32>
    %112 = tpu.concatenate %64, %111 in 0 : vector<4x512xf32>, vector<4x512xf32> -> vector<8x512xf32>
    %113 = vector.extract_strided_slice %112 {offsets = [0, 0], sizes = [8, 256], strides = [1, 1]} : vector<8x512xf32> to vector<8x256xf32>
    %c0_38 = arith.constant 0 : index
    %c32 = arith.constant 32 : index
    %c0_39 = arith.constant 0 : index
    %114 = vector.load %arg9[%c0_38, %c32, %c0_39] : memref<2x40x256xf32, #tpu.memory_space<vmem>>, vector<1x8x256xf32>
    %115 = vector.shape_cast %114 : vector<1x8x256xf32> to vector<8x256xf32>
    %116 = vector.shape_cast %113 : vector<8x256xf32> to vector<1x8x256xf32>
    tpu.vector_store %arg9[%c0_38, %c32, %c0_39], %116 {strides = array<i32>} : memref<2x40x256xf32, #tpu.memory_space<vmem>>, vector<1x8x256xf32>,
    %117 = vector.extract_strided_slice %112 {offsets = [0, 256], sizes = [8, 256], strides = [1, 1]} : vector<8x512xf32> to vector<8x256xf32>
    %c1_40 = arith.constant 1 : index
    %c32_41 = arith.constant 32 : index
    %c0_42 = arith.constant 0 : index
    %118 = vector.load %arg9[%c1_40, %c32_41, %c0_42] : memref<2x40x256xf32, #tpu.memory_space<vmem>>, vector<1x8x256xf32>
    %119 = vector.shape_cast %118 : vector<1x8x256xf32> to vector<8x256xf32>
    %120 = vector.shape_cast %117 : vector<8x256xf32> to vector<1x8x256xf32>
    tpu.vector_store %arg9[%c1_40, %c32_41, %c0_42], %120 {strides = array<i32>} : memref<2x40x256xf32, #tpu.memory_space<vmem>>, vector<1x8x256xf32>,
    return
  }
  func.func @transform_0(%arg0: i32) -> (i32, i32, i32) {
    %c0_i32 = arith.constant 0 : i32
    %c0_i32_0 = arith.constant 0 : i32
    %c0_i32_1 = arith.constant 0 : i32
    return %arg0, %c0_i32, %c0_i32_0 : i32, i32, i32
  }
  func.func @transform_1(%arg0: i32) -> (i32, i32) {
    %c0_i32 = arith.constant 0 : i32
    %c0_i32_0 = arith.constant 0 : i32
    %c0_i32_1 = arith.constant 0 : i32
    return %c0_i32, %c0_i32_0 : i32, i32
  }
  func.func @transform_2(%arg0: i32) -> (i32, i32) {
    %c0_i32 = arith.constant 0 : i32
    %c0_i32_0 = arith.constant 0 : i32
    %c0_i32_1 = arith.constant 0 : i32
    return %c0_i32, %c0_i32_0 : i32, i32
  }
  func.func @transform_3(%arg0: i32) -> (i32, i32) {
    %c0_i32 = arith.constant 0 : i32
    %c0_i32_0 = arith.constant 0 : i32
    %c0_i32_1 = arith.constant 0 : i32
    return %c0_i32, %c0_i32_0 : i32, i32
  }
  func.func @transform_4(%arg0: i32) -> (i32, i32) {
    %c0_i32 = arith.constant 0 : i32
    %c0_i32_0 = arith.constant 0 : i32
    %c0_i32_1 = arith.constant 0 : i32
    return %c0_i32, %c0_i32_0 : i32, i32
  }
  func.func @transform_5(%arg0: i32) -> (i32, i32) {
    %c0_i32 = arith.constant 0 : i32
    %c0_i32_0 = arith.constant 0 : i32
    %c0_i32_1 = arith.constant 0 : i32
    return %c0_i32, %c0_i32_0 : i32, i32
  }
  func.func @transform_6(%arg0: i32) -> (i32, i32) {
    %c0_i32 = arith.constant 0 : i32
    %c0_i32_0 = arith.constant 0 : i32
    %c0_i32_1 = arith.constant 0 : i32
    return %c0_i32, %c0_i32_0 : i32, i32
  }
  func.func @transform_7(%arg0: i32) -> (i32, i32) {
    %c0_i32 = arith.constant 0 : i32
    %c0_i32_0 = arith.constant 0 : i32
    %c0_i32_1 = arith.constant 0 : i32
    return %c0_i32, %c0_i32_0 : i32, i32
  }
  func.func @transform_8(%arg0: i32) -> (i32, i32, i32) {
    %c0_i32 = arith.constant 0 : i32
    %c0_i32_0 = arith.constant 0 : i32
    %c0_i32_1 = arith.constant 0 : i32
    return %arg0, %c0_i32, %c0_i32_0 : i32, i32, i32
  }
}

</mosaic_0001>

<llo_original>
// kernel: tpu_custom_call.1
$region0: #{tpu_custom_call.1}
  #allocation0 [shape = 'u32[]', space=smem, size = 0x4, offset = 0x4, fixed_abs, tag = 'smem constant byte address 0x4 - core index']
  #allocation1 [shape = 'u32[144,128]{1,0:T(1,128)}', space=vmem, size = 0x12000, scoped, tag = 'internal scratch']
  %s0 = inlined_call_operand.hbm [shape: f32[2,32,256], index: 0, kind: input, shape index: {}]
  %s1 = inlined_call_operand.hbm [shape: f32[9,512], index: 1, kind: input, shape index: {}]
  %s2 = inlined_call_operand.vmem [shape: bf16[16,32], index: 2, kind: input, shape index: {}]
  %s3 = inlined_call_operand.vmem [shape: f32[16,1], index: 3, kind: input, shape index: {}]
  %s4 = inlined_call_operand.vmem [shape: bf16[8,144], index: 4, kind: input, shape index: {}]
  %s5 = inlined_call_operand.vmem [shape: f32[8,1], index: 5, kind: input, shape index: {}]
  %s6 = inlined_call_operand.vmem [shape: bf16[4,72], index: 6, kind: input, shape index: {}]
  %s7 = inlined_call_operand.vmem [shape: f32[4,1], index: 7, kind: input, shape index: {}]
  %s8 = inlined_call_operand.hbm [shape: f32[2,40,256], index: 8, kind: output, shape index: {}]
  %s9 = sld [smem:[#allocation0]]
  $region50: #{tpu_custom_call.1} parent=0
    _
  %s11 = ssub.s32 1, %s9
  %s12 = scalar_select 0, %s11, %s9
  $region1: #{tpu_custom_call.1} parent=0
    #allocation2 [shape = 'u8[65536]{0}', space=vmem, size = 0x10000, scoped, tag = 'input window, operand 0, single buffered']
    #allocation3 [shape = 's32[1]{0}', space=sflag, size = 0x4, scoped, tag = 'scoped memory for tpu_custom_call.1']
    #allocation4 [shape = 's32[1]{0}', space=sflag, size = 0x4, scoped, tag = 'scoped memory for tpu_custom_call.1']
    #allocation5 [shape = 'u8[32768]{0}', space=vmem, size = 0x8000, scoped, tag = 'input window, operand 1, single buffered']
    #allocation6 [shape = 's32[1]{0}', space=sflag, size = 0x4, scoped, tag = 'scoped memory for tpu_custom_call.1']
    #allocation7 [shape = 'u8[81920]{0}', space=vmem, size = 0x14000, scoped, tag = 'output window, operand 0, single buffered']
    %13 = vsyncpa [#allocation3], 0
    %14 = vsyncpa [#allocation6], 0
    %15 = vsyncpa [#allocation4], 0
    // Predicated region
    $region2: #{tpu_custom_call.1} parent=1 // pred_check
      _
    $region3: #{tpu_custom_call.1} parent=1 // pred_check_branch
      %17 = sbr.rel (0) target = $region5
    $region4: #{tpu_custom_call.1} parent=1 // pred_region
      %s19 = ssub.s32 2048, 2048
      %20 = vsyncadd [#allocation3], %s19
      %s21 = sshll.u32 [#allocation2], 4
      %s22 = int_to_ptr.vmem [resolvable:$true] %s21
      %27 = dma.hbm_to_vmem [thread:$0]  %s0, 2048, %s22, [#allocation3], 256, 256, 16
    $region5: #{tpu_custom_call.1} parent=1 // pred_fallthru
      _
    // Predicated region
    $region6: #{tpu_custom_call.1} parent=1 // pred_check
      _
    $region7: #{tpu_custom_call.1} parent=1 // pred_check_branch
      %29 = sbr.rel (0) target = $region9
    $region8: #{tpu_custom_call.1} parent=1 // pred_region
      %s31 = ssub.s32 1024, 1024
      %32 = vsyncadd [#allocation6], %s31
      %s33 = sshll.u32 [#allocation5], 4
      %s34 = int_to_ptr.vmem [resolvable:$true] %s33
      %39 = dma.hbm_to_vmem [thread:$0]  %s1, 1024, %s34, [#allocation6], 512, 512, 32
    $region9: #{tpu_custom_call.1} parent=1 // pred_fallthru
      _
    // Predicated region
    $region10: #{tpu_custom_call.1} parent=1 // pred_check
      _
    $region11: #{tpu_custom_call.1} parent=1 // pred_check_branch
      %41 = sbr.rel (0) target = $region13
    $region12: #{tpu_custom_call.1} parent=1 // pred_region
      _
    $region13: #{tpu_custom_call.1} parent=1 // pred_fallthru
      _
    // Predicated region
    $region14: #{tpu_custom_call.1} parent=1 // pred_check
      _
    $region15: #{tpu_custom_call.1} parent=1 // pred_check_branch
      %43 = sbr.rel (0) target = $region17
    $region16: #{tpu_custom_call.1} parent=1 // pred_region
      _
    $region17: #{tpu_custom_call.1} parent=1 // pred_fallthru
      _
    // Predicated region
    $region18: #{tpu_custom_call.1} parent=1 // pred_check
      _
    $region19: #{tpu_custom_call.1} parent=1 // pred_check_branch
      %45 = sbr.rel (0) target = $region21
    $region20: #{tpu_custom_call.1} parent=1 // pred_region
      _
    $region21: #{tpu_custom_call.1} parent=1 // pred_fallthru
      _
    // Predicated region
    $region22: #{tpu_custom_call.1} parent=1 // pred_check
      _
    $region23: #{tpu_custom_call.1} parent=1 // pred_check_branch
      %47 = sbr.rel (0) target = $region25
    $region24: #{tpu_custom_call.1} parent=1 // pred_region
      _
    $region25: #{tpu_custom_call.1} parent=1 // pred_fallthru
      _
    // Predicated region
    $region26: #{tpu_custom_call.1} parent=1 // pred_check
      _
    $region27: #{tpu_custom_call.1} parent=1 // pred_check_branch
      %49 = sbr.rel (0) target = $region29
    $region28: #{tpu_custom_call.1} parent=1 // pred_region
      _
    $region29: #{tpu_custom_call.1} parent=1 // pred_fallthru
      _
    // Predicated region
    $region30: #{tpu_custom_call.1} parent=1 // pred_check
      _
    $region31: #{tpu_custom_call.1} parent=1 // pred_check_branch
      %51 = sbr.rel (0) target = $region33
    $region32: #{tpu_custom_call.1} parent=1 // pred_region
      _
    $region33: #{tpu_custom_call.1} parent=1 // pred_fallthru
      _
    // Predicated region
    $region34: #{tpu_custom_call.1} parent=1 // pred_check
      _
    $region35: #{tpu_custom_call.1} parent=1 // pred_check_branch
      %53 = sbr.rel (0) target = $region37
    $region36: #{tpu_custom_call.1} parent=1 // pred_region
      %54 = dma.done [#allocation3], 2048
    $region37: #{tpu_custom_call.1} parent=1 // pred_fallthru
      _
    // Predicated region
    $region38: #{tpu_custom_call.1} parent=1 // pred_check
      _
    $region39: #{tpu_custom_call.1} parent=1 // pred_check_branch
      %56 = sbr.rel (0) target = $region41
    $region40: #{tpu_custom_call.1} parent=1 // pred_region
      %57 = dma.done [#allocation6], 1024
    $region41: #{tpu_custom_call.1} parent=1 // pred_fallthru
      _
    %v59 = vld [vmem:[#allocation2] sm:$0xff]
    %v60 = vld [vmem:[#allocation2 + $0x8] sm:$0xff]
    %v61 = vld [vmem:[#allocation2 + $0x10] sm:$0xff]
    %v62 = vld [vmem:[#allocation2 + $0x18] sm:$0xff]
    %v63 = vld [vmem:[#allocation2 + $0x20] sm:$0xff]
    %v64 = vld [vmem:[#allocation2 + $0x28] sm:$0xff]
    %v65 = vld [vmem:[#allocation2 + $0x30] sm:$0xff]
    %v66 = vld [vmem:[#allocation2 + $0x38] sm:$0xff]
    %s67 = scalar_lea.vmem [#allocation2], 64
    %v68 = vld [vmem:[%s67] sm:$0xff]
    %v69 = vld [vmem:[%s67 + $0x8] sm:$0xff]
    %v70 = vld [vmem:[%s67 + $0x10] sm:$0xff]
    %v71 = vld [vmem:[%s67 + $0x18] sm:$0xff]
    %v72 = vld [vmem:[%s67 + $0x20] sm:$0xff]
    %v73 = vld [vmem:[%s67 + $0x28] sm:$0xff]
    %v74 = vld [vmem:[%s67 + $0x30] sm:$0xff]
    %v75 = vld [vmem:[%s67 + $0x38] sm:$0xff]
    %76 = vst [vmem:[#allocation7] sm:$0xff] %v59
    %77 = vst [vmem:[#allocation7 + $0x8] sm:$0xff] %v60
    %78 = vst [vmem:[#allocation7 + $0x10] sm:$0xff] %v61
    %79 = vst [vmem:[#allocation7 + $0x18] sm:$0xff] %v62
    %80 = vst [vmem:[#allocation7 + $0x20] sm:$0xff] %v63
    %81 = vst [vmem:[#allocation7 + $0x28] sm:$0xff] %v64
    %82 = vst [vmem:[#allocation7 + $0x30] sm:$0xff] %v65
    %83 = vst [vmem:[#allocation7 + $0x38] sm:$0xff] %v66
    %s84 = scalar_lea.vmem [#allocation7], 80
    %85 = vst [vmem:[%s84] sm:$0xff] %v68
    %86 = vst [vmem:[%s84 + $0x8] sm:$0xff] %v69
    %87 = vst [vmem:[%s84 + $0x10] sm:$0xff] %v70
    %88 = vst [vmem:[%s84 + $0x18] sm:$0xff] %v71
    %89 = vst [vmem:[%s84 + $0x20] sm:$0xff] %v72
    %90 = vst [vmem:[%s84 + $0x28] sm:$0xff] %v73
    %91 = vst [vmem:[%s84 + $0x30] sm:$0xff] %v74
    %92 = vst [vmem:[%s84 + $0x38] sm:$0xff] %v75
    %v93 = vld [vmem:[#allocation5] sm:$0xff]
    %v94 = vld [vmem:[#allocation5 + $0x8] sm:$0xff]
    %v95 = vld [vmem:[#allocation5 + $0x10] sm:$0xff]
    %v96 = vld [vmem:[#allocation5 + $0x18] sm:$0xff]
    %v97 = vld [vmem:[#allocation5 + $0x20] sm:$0x1]
    %v98 = vld [vmem:[#allocation5 + $0x28] sm:$0x1]
    %v99 = vld [vmem:[#allocation5 + $0x30] sm:$0x1]
    %v100 = vld [vmem:[#allocation5 + $0x38] sm:$0x1]
    %v101 = vld [vmem:[%s2] sm:$0xf]
    %v102 = vld [vmem:[%s2 + $0x4] sm:$0xf]
    %v103 = vpack.c.bf16 %v61, %v59
    %v104 = vpack.c.bf16 %v62, %v60
    %v105 = vpack.c.bf16 %v70, %v68
    %v106 = vpack.c.bf16 %v71, %v69
    %v107 = vpack.c.bf16 %v65, %v63
    %v108 = vpack.c.bf16 %v66, %v64
    %v109 = vpack.c.bf16 %v74, %v72
    %v110 = vpack.c.bf16 %v75, %v73
    %v111 = vld [vmem:[%s3] sm:$0xff]
    %v112 = vld [vmem:[%s3 + $0x8] sm:$0xff]
    %114 = vset.pattern.permute.xlu0 0
    %115 = vperm.xlu0 %114, %v111
    %v116 = vpop.permute.xlu0 %115
    %119 = vset.pattern.permute.xlu0 0
    %120 = vperm.xlu0 %119, %v112
    %v121 = vpop.permute.xlu0 %120
    %v125 = vunpack.c.l.b16 %v101
    %v126 = vunpack.c.l.b16 %v102
    %v127 = vpack.c.b16 %v126, %v125
    %vm128 = vcmask 261120
    %v130 = vsel %vm128, %v127, 0
    %132 = vmatprep.subr.bf16.mxu0 %v104
    %133 = vmatpush1.bf16.msra.mxu0 %v103
    %134 = vmatprep.subr.bf16.mxu0 %v108
    %135 = vmatpush1.bf16.msra.mxu0 %v107
    %136 = vmatprep.subr.bf16.mxu0 0
    %137 = vmatpush1.bf16.msra.mxu0 0
    %138 = vmatprep.subr.bf16.mxu0 0
    %139 = vmatpush1.bf16.msra.mxu0 0
    %140 = vmatprep.subr.bf16.mxu0 0
    %141 = vmatpush1.bf16.msra.mxu0 0
    %142 = vmatprep.subr.bf16.mxu0 0
    %143 = vmatpush1.bf16.msra.mxu0 0
    %144 = vmatprep.subr.bf16.mxu0 0
    %145 = vmatpush1.bf16.msra.mxu0 0
    %146 = vmatprep.subr.bf16.mxu0 0
    %147 = vmatpush1.bf16.msra.mxu0 0
    %148 = vmatprep.subr.bf16.mxu0 0
    %149 = vmatpush1.bf16.msra.mxu0 0
    %150 = vmatprep.subr.bf16.mxu0 0
    %151 = vmatpush1.bf16.msra.mxu0 0
    %152 = vmatprep.subr.bf16.mxu0 0
    %153 = vmatpush1.bf16.msra.mxu0 0
    %154 = vmatprep.subr.bf16.mxu0 0
    %155 = vmatpush1.bf16.msra.mxu0 0
    %156 = vmatprep.subr.bf16.mxu0 0
    %157 = vmatpush1.bf16.msra.mxu0 0
    %158 = vmatprep.subr.bf16.mxu0 0
    %159 = vmatpush1.bf16.msra.mxu0 0
    %160 = vmatprep.subr.bf16.mxu0 0
    %161 = vmatpush1.bf16.msra.mxu0 0
    %162 = vmatprep.subr.bf16.mxu0 0
    %163 = vmatpush1.bf16.msra.mxu0 0
    %164 = vmatprep.mubr.bf16.mxu0 0
    %165 = vmatmul.mubr.bf16.gmra.mrb[0].mxu0 %v130
    %v166 = vpop.f32.mrb[0].mxu0
    %v167 = vadd.f32 %v116, %v166
    %v168 = vpop.f32.mrb[0].mxu0
    %v169 = vadd.f32 %v116, %v168
    %v170 = vpop.f32.mrb[0].mxu0
    %v171 = vadd.f32 %v121, %v170
    %v172 = vpop.f32.mrb[0].mxu0
    %v173 = vadd.f32 %v121, %v172
    %174 = vdwg.mxu0
    %175 = vmatprep.subr.bf16.mxu0 %v106
    %176 = vmatpush1.bf16.msra.mxu0 %v105
    %177 = vmatprep.subr.bf16.mxu0 %v110
    %178 = vmatpush1.bf16.msra.mxu0 %v109
    %179 = vmatprep.subr.bf16.mxu0 0
    %180 = vmatpush1.bf16.msra.mxu0 0
    %181 = vmatprep.subr.bf16.mxu0 0
    %182 = vmatpush1.bf16.msra.mxu0 0
    %183 = vmatprep.subr.bf16.mxu0 0
    %184 = vmatpush1.bf16.msra.mxu0 0
    %185 = vmatprep.subr.bf16.mxu0 0
    %186 = vmatpush1.bf16.msra.mxu0 0
    %187 = vmatprep.subr.bf16.mxu0 0
    %188 = vmatpush1.bf16.msra.mxu0 0
    %189 = vmatprep.subr.bf16.mxu0 0
    %190 = vmatpush1.bf16.msra.mxu0 0
    %191 = vmatprep.subr.bf16.mxu0 0
    %192 = vmatpush1.bf16.msra.mxu0 0
    %193 = vmatprep.subr.bf16.mxu0 0
    %194 = vmatpush1.bf16.msra.mxu0 0
    %195 = vmatprep.subr.bf16.mxu0 0
    %196 = vmatpush1.bf16.msra.mxu0 0
    %197 = vmatprep.subr.bf16.mxu0 0
    %198 = vmatpush1.bf16.msra.mxu0 0
    %199 = vmatprep.subr.bf16.mxu0 0
    %200 = vmatpush1.bf16.msra.mxu0 0
    %201 = vmatprep.subr.bf16.mxu0 0
    %202 = vmatpush1.bf16.msra.mxu0 0
    %203 = vmatprep.subr.bf16.mxu0 0
    %204 = vmatpush1.bf16.msra.mxu0 0
    %205 = vmatprep.subr.bf16.mxu0 0
    %206 = vmatpush1.bf16.msra.mxu0 0
    %207 = vmatprep.mubr.bf16.mxu0 0
    %208 = vmatmul.mubr.bf16.gmra.mrb[0].mxu0 %v130
    %v209 = vpop.f32.mrb[0].mxu0
    %v210 = vadd.f32 %v116, %v209
    %v211 = vpop.f32.mrb[0].mxu0
    %v212 = vadd.f32 %v116, %v211
    %v213 = vpop.f32.mrb[0].mxu0
    %v214 = vadd.f32 %v121, %v213
    %v215 = vpop.f32.mrb[0].mxu0
    %v216 = vadd.f32 %v121, %v215
    %217 = vdwg.mxu0
    %v218 = vmax.f32 %v167, 0.0
    %v219 = vmax.f32 %v169, 0.0
    %v220 = vmax.f32 %v210, 0.0
    %v221 = vmax.f32 %v212, 0.0
    %v222 = vmax.f32 %v171, 0.0
    %v223 = vmax.f32 %v173, 0.0
    %v224 = vmax.f32 %v214, 0.0
    %v225 = vmax.f32 %v216, 0.0
    %226 = vrot.lane.b32.xlu0 %v218, 17
    %v227 = vpop.permute.xlu0 %226
    %228 = vrot.lane.b32.xlu0 %v222, 17
    %v229 = vpop.permute.xlu0 %228
    %230 = vrot.lane.b32.xlu0 %v219, 17
    %v231 = vpop.permute.xlu0 %230
    %232 = vrot.lane.b32.xlu0 %v223, 17
    %v233 = vpop.permute.xlu0 %232
    %234 = vrot.lane.b32.xlu0 %v220, 17
    %v235 = vpop.permute.xlu0 %234
    %236 = vrot.lane.b32.xlu0 %v224, 17
    %v237 = vpop.permute.xlu0 %236
    %238 = vrot.lane.b32.xlu0 %v221, 17
    %v239 = vpop.permute.xlu0 %238
    %240 = vrot.lane.b32.xlu0 %v225, 17
    %v241 = vpop.permute.xlu0 %240
    %v242 = vlaneseq
    %v243 = vand.u32 %v242, 127
    %vm244 = vcmp.lt.s32.totalorder %v243, 17
    %v245 = vsel %vm244, %v235, %v239
    %v246 = vsel %vm244, %v237, %v241
    %v247 = vsel %vm244, %v231, %v235
    %v248 = vsel %vm244, %v233, %v237
    %v249 = vsel %vm244, %v227, %v231
    %v250 = vsel %vm244, %v229, %v233
    %v251 = vsel %vm244, %v239, %v227
    %v252 = vsel %vm244, %v241, %v229
    %v253 = vlaneseq
    %v254 = vshrl.u32 %v253, 7
    %v255 = vsub.s32 0, %v254
    %v256 = vrot.slane %v93, %v255
    %v257 = vlaneseq
    %v258 = vshrl.u32 %v257, 7
    %v259 = vsub.s32 0, %v258
    %v260 = vrot.slane %v94, %v259
    %v261 = vlaneseq
    %v262 = vshrl.u32 %v261, 7
    %v263 = vsub.s32 0, %v262
    %v264 = vrot.slane %v95, %v263
    %v265 = vlaneseq
    %v266 = vshrl.u32 %v265, 7
    %v267 = vsub.s32 0, %v266
    %v268 = vrot.slane %v96, %v267
    %v269 = vmul.f32 %v251, %v256
    %v270 = vmul.f32 %v249, %v260
    %v271 = vmul.f32 %v247, %v264
    %v272 = vmul.f32 %v245, %v268
    %v273 = vmul.f32 %v252, %v256
    %v274 = vmul.f32 %v250, %v260
    %v275 = vmul.f32 %v248, %v264
    %v276 = vmul.f32 %v246, %v268
    %277 = vrot.lane.b32.xlu0 %v218, 16
    %v278 = vpop.permute.xlu0 %277
    %279 = vrot.lane.b32.xlu0 %v222, 16
    %v280 = vpop.permute.xlu0 %279
    %281 = vrot.lane.b32.xlu0 %v219, 16
    %v282 = vpop.permute.xlu0 %281
    %283 = vrot.lane.b32.xlu0 %v223, 16
    %v284 = vpop.permute.xlu0 %283
    %285 = vrot.lane.b32.xlu0 %v220, 16
    %v286 = vpop.permute.xlu0 %285
    %287 = vrot.lane.b32.xlu0 %v224, 16
    %v288 = vpop.permute.xlu0 %287
    %289 = vrot.lane.b32.xlu0 %v221, 16
    %v290 = vpop.permute.xlu0 %289
    %291 = vrot.lane.b32.xlu0 %v225, 16
    %v292 = vpop.permute.xlu0 %291
    %vm293 = vcmp.lt.s32.totalorder %v243, 16
    %v294 = vsel %vm293, %v286, %v290
    %v295 = vsel %vm293, %v288, %v292
    %v296 = vsel %vm293, %v282, %v286
    %v297 = vsel %vm293, %v284, %v288
    %v298 = vsel %vm293, %v278, %v282
    %v299 = vsel %vm293, %v280, %v284
    %v300 = vsel %vm293, %v290, %v278
    %v301 = vsel %vm293, %v292, %v280
    %v302 = vlaneseq
    %v303 = vshrl.u32 %v302, 7
    %v304 = vsub.s32 1, %v303
    %v305 = vrot.slane %v93, %v304
    %v306 = vlaneseq
    %v307 = vshrl.u32 %v306, 7
    %v308 = vsub.s32 1, %v307
    %v309 = vrot.slane %v94, %v308
    %v310 = vlaneseq
    %v311 = vshrl.u32 %v310, 7
    %v312 = vsub.s32 1, %v311
    %v313 = vrot.slane %v95, %v312
    %v314 = vlaneseq
    %v315 = vshrl.u32 %v314, 7
    %v316 = vsub.s32 1, %v315
    %v317 = vrot.slane %v96, %v316
    %v318 = vmul.f32 %v300, %v305
    %v319 = vmul.f32 %v298, %v309
    %v320 = vmul.f32 %v296, %v313
    %v321 = vmul.f32 %v294, %v317
    %v322 = vmul.f32 %v301, %v305
    %v323 = vmul.f32 %v299, %v309
    %v324 = vmul.f32 %v297, %v313
    %v325 = vmul.f32 %v295, %v317
    %326 = vrot.lane.b32.xlu0 %v218, 15
    %v327 = vpop.permute.xlu0 %326
    %328 = vrot.lane.b32.xlu0 %v222, 15
    %v329 = vpop.permute.xlu0 %328
    %330 = vrot.lane.b32.xlu0 %v219, 15
    %v331 = vpop.permute.xlu0 %330
    %332 = vrot.lane.b32.xlu0 %v223, 15
    %v333 = vpop.permute.xlu0 %332
    %334 = vrot.lane.b32.xlu0 %v220, 15
    %v335 = vpop.permute.xlu0 %334
    %336 = vrot.lane.b32.xlu0 %v224, 15
    %v337 = vpop.permute.xlu0 %336
    %338 = vrot.lane.b32.xlu0 %v221, 15
    %v339 = vpop.permute.xlu0 %338
    %340 = vrot.lane.b32.xlu0 %v225, 15
    %v341 = vpop.permute.xlu0 %340
    %vm342 = vcmp.lt.s32.totalorder %v243, 15
    %v343 = vsel %vm342, %v335, %v339
    %v344 = vsel %vm342, %v337, %v341
    %v345 = vsel %vm342, %v331, %v335
    %v346 = vsel %vm342, %v333, %v337
    %v347 = vsel %vm342, %v327, %v331
    %v348 = vsel %vm342, %v329, %v333
    %v349 = vsel %vm342, %v339, %v327
    %v350 = vsel %vm342, %v341, %v329
    %v351 = vlaneseq
    %v352 = vshrl.u32 %v351, 7
    %v353 = vsub.s32 2, %v352
    %v354 = vrot.slane %v93, %v353
    %v355 = vlaneseq
    %v356 = vshrl.u32 %v355, 7
    %v357 = vsub.s32 2, %v356
    %v358 = vrot.slane %v94, %v357
    %v359 = vlaneseq
    %v360 = vshrl.u32 %v359, 7
    %v361 = vsub.s32 2, %v360
    %v362 = vrot.slane %v95, %v361
    %v363 = vlaneseq
    %v364 = vshrl.u32 %v363, 7
    %v365 = vsub.s32 2, %v364
    %v366 = vrot.slane %v96, %v365
    %v367 = vmul.f32 %v349, %v354
    %v368 = vmul.f32 %v347, %v358
    %v369 = vmul.f32 %v345, %v362
    %v370 = vmul.f32 %v343, %v366
    %v371 = vmul.f32 %v350, %v354
    %v372 = vmul.f32 %v348, %v358
    %v373 = vmul.f32 %v346, %v362
    %v374 = vmul.f32 %v344, %v366
    %375 = vrot.lane.b32.xlu0 %v218, 1
    %v376 = vpop.permute.xlu0 %375
    %377 = vrot.lane.b32.xlu0 %v222, 1
    %v378 = vpop.permute.xlu0 %377
    %379 = vrot.lane.b32.xlu0 %v219, 1
    %v380 = vpop.permute.xlu0 %379
    %381 = vrot.lane.b32.xlu0 %v223, 1
    %v382 = vpop.permute.xlu0 %381
    %383 = vrot.lane.b32.xlu0 %v220, 1
    %v384 = vpop.permute.xlu0 %383
    %385 = vrot.lane.b32.xlu0 %v224, 1
    %v386 = vpop.permute.xlu0 %385
    %387 = vrot.lane.b32.xlu0 %v221, 1
    %v388 = vpop.permute.xlu0 %387
    %389 = vrot.lane.b32.xlu0 %v225, 1
    %v390 = vpop.permute.xlu0 %389
    %vm391 = vcmp.lt.s32.totalorder %v243, 1
    %v392 = vsel %vm391, %v384, %v388
    %v393 = vsel %vm391, %v386, %v390
    %v394 = vsel %vm391, %v380, %v384
    %v395 = vsel %vm391, %v382, %v386
    %v396 = vsel %vm391, %v376, %v380
    %v397 = vsel %vm391, %v378, %v382
    %v398 = vsel %vm391, %v388, %v376
    %v399 = vsel %vm391, %v390, %v378
    %v400 = vlaneseq
    %v401 = vshrl.u32 %v400, 7
    %v402 = vsub.s32 3, %v401
    %v403 = vrot.slane %v93, %v402
    %v404 = vlaneseq
    %v405 = vshrl.u32 %v404, 7
    %v406 = vsub.s32 3, %v405
    %v407 = vrot.slane %v94, %v406
    %v408 = vlaneseq
    %v409 = vshrl.u32 %v408, 7
    %v410 = vsub.s32 3, %v409
    %v411 = vrot.slane %v95, %v410
    %v412 = vlaneseq
    %v413 = vshrl.u32 %v412, 7
    %v414 = vsub.s32 3, %v413
    %v415 = vrot.slane %v96, %v414
    %v416 = vmul.f32 %v398, %v403
    %v417 = vmul.f32 %v396, %v407
    %v418 = vmul.f32 %v394, %v411
    %v419 = vmul.f32 %v392, %v415
    %v420 = vmul.f32 %v399, %v403
    %v421 = vmul.f32 %v397, %v407
    %v422 = vmul.f32 %v395, %v411
    %v423 = vmul.f32 %v393, %v415
    %v424 = vlaneseq
    %v425 = vshrl.u32 %v424, 7
    %v426 = vsub.s32 4, %v425
    %v427 = vrot.slane %v93, %v426
    %v428 = vlaneseq
    %v429 = vshrl.u32 %v428, 7
    %v430 = vsub.s32 4, %v429
    %v431 = vrot.slane %v94, %v430
    %v432 = vlaneseq
    %v433 = vshrl.u32 %v432, 7
    %v434 = vsub.s32 4, %v433
    %v435 = vrot.slane %v95, %v434
    %v436 = vlaneseq
    %v437 = vshrl.u32 %v436, 7
    %v438 = vsub.s32 4, %v437
    %v439 = vrot.slane %v96, %v438
    %v440 = vmul.f32 %v218, %v427
    %v441 = vmul.f32 %v219, %v431
    %v442 = vmul.f32 %v220, %v435
    %v443 = vmul.f32 %v221, %v439
    %v444 = vmul.f32 %v222, %v427
    %v445 = vmul.f32 %v223, %v431
    %v446 = vmul.f32 %v224, %v435
    %v447 = vmul.f32 %v225, %v439
    %448 = vrot.lane.b32.xlu0 %v218, 127
    %v449 = vpop.permute.xlu0 %448
    %450 = vrot.lane.b32.xlu0 %v222, 127
    %v451 = vpop.permute.xlu0 %450
    %452 = vrot.lane.b32.xlu0 %v219, 127
    %v453 = vpop.permute.xlu0 %452
    %454 = vrot.lane.b32.xlu0 %v223, 127
    %v455 = vpop.permute.xlu0 %454
    %456 = vrot.lane.b32.xlu0 %v220, 127
    %v457 = vpop.permute.xlu0 %456
    %458 = vrot.lane.b32.xlu0 %v224, 127
    %v459 = vpop.permute.xlu0 %458
    %460 = vrot.lane.b32.xlu0 %v221, 127
    %v461 = vpop.permute.xlu0 %460
    %462 = vrot.lane.b32.xlu0 %v225, 127
    %v463 = vpop.permute.xlu0 %462
    %vm464 = vcmp.lt.s32.totalorder %v243, 127
    %v465 = vsel %vm464, %v457, %v461
    %v466 = vsel %vm464, %v459, %v463
    %v467 = vsel %vm464, %v453, %v457
    %v468 = vsel %vm464, %v455, %v459
    %v469 = vsel %vm464, %v449, %v453
    %v470 = vsel %vm464, %v451, %v455
    %v471 = vsel %vm464, %v461, %v449
    %v472 = vsel %vm464, %v463, %v451
    %v473 = vlaneseq
    %v474 = vshrl.u32 %v473, 7
    %v475 = vsub.s32 5, %v474
    %v476 = vrot.slane %v93, %v475
    %v477 = vlaneseq
    %v478 = vshrl.u32 %v477, 7
    %v479 = vsub.s32 5, %v478
    %v480 = vrot.slane %v94, %v479
    %v481 = vlaneseq
    %v482 = vshrl.u32 %v481, 7
    %v483 = vsub.s32 5, %v482
    %v484 = vrot.slane %v95, %v483
    %v485 = vlaneseq
    %v486 = vshrl.u32 %v485, 7
    %v487 = vsub.s32 5, %v486
    %v488 = vrot.slane %v96, %v487
    %v489 = vmul.f32 %v469, %v476
    %v490 = vmul.f32 %v467, %v480
    %v491 = vmul.f32 %v465, %v484
    %v492 = vmul.f32 %v471, %v488
    %v493 = vmul.f32 %v470, %v476
    %v494 = vmul.f32 %v468, %v480
    %v495 = vmul.f32 %v466, %v484
    %v496 = vmul.f32 %v472, %v488
    %497 = vrot.lane.b32.xlu0 %v218, 113
    %v498 = vpop.permute.xlu0 %497
    %499 = vrot.lane.b32.xlu0 %v222, 113
    %v500 = vpop.permute.xlu0 %499
    %501 = vrot.lane.b32.xlu0 %v219, 113
    %v502 = vpop.permute.xlu0 %501
    %503 = vrot.lane.b32.xlu0 %v223, 113
    %v504 = vpop.permute.xlu0 %503
    %505 = vrot.lane.b32.xlu0 %v220, 113
    %v506 = vpop.permute.xlu0 %505
    %507 = vrot.lane.b32.xlu0 %v224, 113
    %v508 = vpop.permute.xlu0 %507
    %509 = vrot.lane.b32.xlu0 %v221, 113
    %v510 = vpop.permute.xlu0 %509
    %511 = vrot.lane.b32.xlu0 %v225, 113
    %v512 = vpop.permute.xlu0 %511
    %vm513 = vcmp.lt.s32.totalorder %v243, 113
    %v514 = vsel %vm513, %v506, %v510
    %v515 = vsel %vm513, %v508, %v512
    %v516 = vsel %vm513, %v502, %v506
    %v517 = vsel %vm513, %v504, %v508
    %v518 = vsel %vm513, %v498, %v502
    %v519 = vsel %vm513, %v500, %v504
    %v520 = vsel %vm513, %v510, %v498
    %v521 = vsel %vm513, %v512, %v500
    %v522 = vlaneseq
    %v523 = vshrl.u32 %v522, 7
    %v524 = vsub.s32 6, %v523
    %v525 = vrot.slane %v93, %v524
    %v526 = vlaneseq
    %v527 = vshrl.u32 %v526, 7
    %v528 = vsub.s32 6, %v527
    %v529 = vrot.slane %v94, %v528
    %v530 = vlaneseq
    %v531 = vshrl.u32 %v530, 7
    %v532 = vsub.s32 6, %v531
    %v533 = vrot.slane %v95, %v532
    %v534 = vlaneseq
    %v535 = vshrl.u32 %v534, 7
    %v536 = vsub.s32 6, %v535
    %v537 = vrot.slane %v96, %v536
    %v538 = vmul.f32 %v518, %v525
    %v539 = vmul.f32 %v516, %v529
    %v540 = vmul.f32 %v514, %v533
    %v541 = vmul.f32 %v520, %v537
    %v542 = vmul.f32 %v519, %v525
    %v543 = vmul.f32 %v517, %v529
    %v544 = vmul.f32 %v515, %v533
    %v545 = vmul.f32 %v521, %v537
    %546 = vrot.lane.b32.xlu0 %v218, 112
    %v547 = vpop.permute.xlu0 %546
    %548 = vrot.lane.b32.xlu0 %v222, 112
    %v549 = vpop.permute.xlu0 %548
    %550 = vrot.lane.b32.xlu0 %v219, 112
    %v551 = vpop.permute.xlu0 %550
    %552 = vrot.lane.b32.xlu0 %v223, 112
    %v553 = vpop.permute.xlu0 %552
    %554 = vrot.lane.b32.xlu0 %v220, 112
    %v555 = vpop.permute.xlu0 %554
    %556 = vrot.lane.b32.xlu0 %v224, 112
    %v557 = vpop.permute.xlu0 %556
    %558 = vrot.lane.b32.xlu0 %v221, 112
    %v559 = vpop.permute.xlu0 %558
    %560 = vrot.lane.b32.xlu0 %v225, 112
    %v561 = vpop.permute.xlu0 %560
    %vm562 = vcmp.lt.s32.totalorder %v243, 112
    %v563 = vsel %vm562, %v555, %v559
    %v564 = vsel %vm562, %v557, %v561
    %v565 = vsel %vm562, %v551, %v555
    %v566 = vsel %vm562, %v553, %v557
    %v567 = vsel %vm562, %v547, %v551
    %v568 = vsel %vm562, %v549, %v553
    %v569 = vsel %vm562, %v559, %v547
    %v570 = vsel %vm562, %v561, %v549
    %v571 = vlaneseq
    %v572 = vshrl.u32 %v571, 7
    %v573 = vsub.s32 7, %v572
    %v574 = vrot.slane %v93, %v573
    %v575 = vlaneseq
    %v576 = vshrl.u32 %v575, 7
    %v577 = vsub.s32 7, %v576
    %v578 = vrot.slane %v94, %v577
    %v579 = vlaneseq
    %v580 = vshrl.u32 %v579, 7
    %v581 = vsub.s32 7, %v580
    %v582 = vrot.slane %v95, %v581
    %v583 = vlaneseq
    %v584 = vshrl.u32 %v583, 7
    %v585 = vsub.s32 7, %v584
    %v586 = vrot.slane %v96, %v585
    %v587 = vmul.f32 %v567, %v574
    %v588 = vmul.f32 %v565, %v578
    %v589 = vmul.f32 %v563, %v582
    %v590 = vmul.f32 %v569, %v586
    %v591 = vmul.f32 %v568, %v574
    %v592 = vmul.f32 %v566, %v578
    %v593 = vmul.f32 %v564, %v582
    %v594 = vmul.f32 %v570, %v586
    %595 = vrot.lane.b32.xlu0 %v218, 111
    %v596 = vpop.permute.xlu0 %595
    %597 = vrot.lane.b32.xlu0 %v222, 111
    %v598 = vpop.permute.xlu0 %597
    %599 = vrot.lane.b32.xlu0 %v219, 111
    %v600 = vpop.permute.xlu0 %599
    %601 = vrot.lane.b32.xlu0 %v223, 111
    %v602 = vpop.permute.xlu0 %601
    %603 = vrot.lane.b32.xlu0 %v220, 111
    %v604 = vpop.permute.xlu0 %603
    %605 = vrot.lane.b32.xlu0 %v224, 111
    %v606 = vpop.permute.xlu0 %605
    %607 = vrot.lane.b32.xlu0 %v221, 111
    %v608 = vpop.permute.xlu0 %607
    %609 = vrot.lane.b32.xlu0 %v225, 111
    %v610 = vpop.permute.xlu0 %609
    %vm611 = vcmp.lt.s32.totalorder %v243, 111
    %v612 = vsel %vm611, %v604, %v608
    %v613 = vsel %vm611, %v606, %v610
    %v614 = vsel %vm611, %v600, %v604
    %v615 = vsel %vm611, %v602, %v606
    %v616 = vsel %vm611, %v596, %v600
    %v617 = vsel %vm611, %v598, %v602
    %v618 = vsel %vm611, %v608, %v596
    %v619 = vsel %vm611, %v610, %v598
    %v620 = vlaneseq
    %v621 = vshrl.u32 %v620, 7
    %v622 = vsub.s32 0, %v621
    %v623 = vrot.slane %v97, %v622
    %v624 = vlaneseq
    %v625 = vshrl.u32 %v624, 7
    %v626 = vsub.s32 0, %v625
    %v627 = vrot.slane %v98, %v626
    %v628 = vlaneseq
    %v629 = vshrl.u32 %v628, 7
    %v630 = vsub.s32 0, %v629
    %v631 = vrot.slane %v99, %v630
    %v632 = vlaneseq
    %v633 = vshrl.u32 %v632, 7
    %v634 = vsub.s32 0, %v633
    %v635 = vrot.slane %v100, %v634
    %v636 = vmul.f32 %v616, %v623
    %v637 = vmul.f32 %v614, %v627
    %v638 = vmul.f32 %v612, %v631
    %v639 = vmul.f32 %v618, %v635
    %v640 = vmul.f32 %v617, %v623
    %v641 = vmul.f32 %v615, %v627
    %v642 = vmul.f32 %v613, %v631
    %v643 = vmul.f32 %v619, %v635
    %v644 = vpack.c.bf16 %v273, %v269
    %v645 = vpack.c.bf16 %v274, %v270
    %v646 = vpack.c.bf16 %v275, %v271
    %v647 = vpack.c.bf16 %v276, %v272
    %v648 = vpack.c.bf16 %v322, %v318
    %v649 = vpack.c.bf16 %v323, %v319
    %v650 = vpack.c.bf16 %v324, %v320
    %v651 = vpack.c.bf16 %v325, %v321
    %v652 = vpack.c.bf16 %v371, %v367
    %v653 = vpack.c.bf16 %v372, %v368
    %v654 = vpack.c.bf16 %v373, %v369
    %v655 = vpack.c.bf16 %v374, %v370
    %v656 = vpack.c.bf16 %v420, %v416
    %v657 = vpack.c.bf16 %v421, %v417
    %v658 = vpack.c.bf16 %v422, %v418
    %v659 = vpack.c.bf16 %v423, %v419
    %v660 = vpack.c.bf16 %v444, %v440
    %v661 = vpack.c.bf16 %v445, %v441
    %v662 = vpack.c.bf16 %v446, %v442
    %v663 = vpack.c.bf16 %v447, %v443
    %v664 = vpack.c.bf16 %v493, %v489
    %v665 = vpack.c.bf16 %v494, %v490
    %v666 = vpack.c.bf16 %v495, %v491
    %v667 = vpack.c.bf16 %v496, %v492
    %v668 = vpack.c.bf16 %v542, %v538
    %v669 = vpack.c.bf16 %v543, %v539
    %v670 = vpack.c.bf16 %v544, %v540
    %v671 = vpack.c.bf16 %v545, %v541
    %v672 = vpack.c.bf16 %v591, %v587
    %v673 = vpack.c.bf16 %v592, %v588
    %v674 = vpack.c.bf16 %v593, %v589
    %v675 = vpack.c.bf16 %v594, %v590
    %v676 = vpack.c.bf16 %v640, %v636
    %v677 = vpack.c.bf16 %v641, %v637
    %v678 = vpack.c.bf16 %v642, %v638
    %v679 = vpack.c.bf16 %v643, %v639
    %v680 = vld [vmem:[%s4] sm:$0xff]
    %v681 = vld [vmem:[%s5] sm:$0xff]
    %683 = vset.pattern.permute.xlu0 0
    %684 = vperm.xlu0 %683, %v681
    %v685 = vpop.permute.xlu0 %684
    %v688 = vunpack.c.l.b16 %v680
    %v689 = vunpack.c.h.b16 %v680
    %v690 = vpack.c.b16 %v688, %v688
    %v691 = vpack.c.b16 %v689, %v689
    %vm693 = vcmask 130048
    %v695 = vsel %vm693, %v691, 0
    %697 = vmatprep.subr.bf16.mxu0 %v645
    %698 = vmatpush1.bf16.msra.mxu0 %v644
    %699 = vmatprep.subr.bf16.mxu0 %v649
    %700 = vmatpush1.bf16.msra.mxu0 %v648
    %701 = vmatprep.subr.bf16.mxu0 %v653
    %702 = vmatpush1.bf16.msra.mxu0 %v652
    %703 = vmatprep.subr.bf16.mxu0 %v657
    %704 = vmatpush1.bf16.msra.mxu0 %v656
    %705 = vmatprep.subr.bf16.mxu0 %v661
    %706 = vmatpush1.bf16.msra.mxu0 %v660
    %707 = vmatprep.subr.bf16.mxu0 %v665
    %708 = vmatpush1.bf16.msra.mxu0 %v664
    %709 = vmatprep.subr.bf16.mxu0 %v669
    %710 = vmatpush1.bf16.msra.mxu0 %v668
    %711 = vmatprep.subr.bf16.mxu0 %v673
    %712 = vmatpush1.bf16.msra.mxu0 %v672
    %713 = vmatprep.subr.bf16.mxu0 %v677
    %714 = vmatpush1.bf16.msra.mxu0 %v676
    %715 = vmatprep.subr.bf16.mxu0 0
    %716 = vmatpush1.bf16.msra.mxu0 0
    %717 = vmatprep.subr.bf16.mxu0 0
    %718 = vmatpush1.bf16.msra.mxu0 0
    %719 = vmatprep.subr.bf16.mxu0 0
    %720 = vmatpush1.bf16.msra.mxu0 0
    %721 = vmatprep.subr.bf16.mxu0 0
    %722 = vmatpush1.bf16.msra.mxu0 0
    %723 = vmatprep.subr.bf16.mxu0 0
    %724 = vmatpush1.bf16.msra.mxu0 0
    %725 = vmatprep.subr.bf16.mxu0 0
    %726 = vmatpush1.bf16.msra.mxu0 0
    %727 = vmatprep.subr.bf16.mxu0 0
    %728 = vmatpush1.bf16.msra.mxu0 0
    %729 = vmatprep.mubr.bf16.mxu0 %v695
    %730 = vmatmul.mubr.bf16.gmra.mrb[0].mxu0 %v690
    %v731 = vpop.f32.mrb[0].mxu0
    %v732 = vadd.f32 %v685, %v731
    %v733 = vpop.f32.mrb[0].mxu0
    %v734 = vadd.f32 %v685, %v733
    %v735 = vpop.f32.mrb[0].mxu0
    %v736 = vpop.f32.mrb[0].mxu0
    %737 = vdwg.mxu0
    %738 = vmatprep.subr.bf16.mxu0 %v647
    %739 = vmatpush1.bf16.msra.mxu0 %v646
    %740 = vmatprep.subr.bf16.mxu0 %v651
    %741 = vmatpush1.bf16.msra.mxu0 %v650
    %742 = vmatprep.subr.bf16.mxu0 %v655
    %743 = vmatpush1.bf16.msra.mxu0 %v654
    %744 = vmatprep.subr.bf16.mxu0 %v659
    %745 = vmatpush1.bf16.msra.mxu0 %v658
    %746 = vmatprep.subr.bf16.mxu0 %v663
    %747 = vmatpush1.bf16.msra.mxu0 %v662
    %748 = vmatprep.subr.bf16.mxu0 %v667
    %749 = vmatpush1.bf16.msra.mxu0 %v666
    %750 = vmatprep.subr.bf16.mxu0 %v671
    %751 = vmatpush1.bf16.msra.mxu0 %v670
    %752 = vmatprep.subr.bf16.mxu0 %v675
    %753 = vmatpush1.bf16.msra.mxu0 %v674
    %754 = vmatprep.subr.bf16.mxu0 %v679
    %755 = vmatpush1.bf16.msra.mxu0 %v678
    %756 = vmatprep.subr.bf16.mxu0 0
    %757 = vmatpush1.bf16.msra.mxu0 0
    %758 = vmatprep.subr.bf16.mxu0 0
    %759 = vmatpush1.bf16.msra.mxu0 0
    %760 = vmatprep.subr.bf16.mxu0 0
    %761 = vmatpush1.bf16.msra.mxu0 0
    %762 = vmatprep.subr.bf16.mxu0 0
    %763 = vmatpush1.bf16.msra.mxu0 0
    %764 = vmatprep.subr.bf16.mxu0 0
    %765 = vmatpush1.bf16.msra.mxu0 0
    %766 = vmatprep.subr.bf16.mxu0 0
    %767 = vmatpush1.bf16.msra.mxu0 0
    %768 = vmatprep.subr.bf16.mxu0 0
    %769 = vmatpush1.bf16.msra.mxu0 0
    %770 = vmatprep.mubr.bf16.mxu0 %v695
    %771 = vmatmul.mubr.bf16.gmra.mrb[0].mxu0 %v690
    %v772 = vpop.f32.mrb[0].mxu0
    %v773 = vadd.f32 %v685, %v772
    %v774 = vpop.f32.mrb[0].mxu0
    %v775 = vadd.f32 %v685, %v774
    %v776 = vpop.f32.mrb[0].mxu0
    %v777 = vpop.f32.mrb[0].mxu0
    %778 = vdwg.mxu0
    %v779 = vmax.f32 %v732, 0.0
    %v780 = vmax.f32 %v734, 0.0
    %v781 = vmax.f32 %v773, 0.0
    %v782 = vmax.f32 %v775, 0.0
    %v787 = vrot.slane %v779, 4
    %v788 = vrot.slane %v780, 4
    %v789 = vrot.slane %v781, 4
    %v790 = vrot.slane %v782, 4
    %vm795 = vcmask 1043456
    %v796 = vsel %vm795, %v787, 0.0
    %v797 = vsel %vm795, %v788, 0.0
    %v798 = vsel %vm795, %v789, 0.0
    %v799 = vsel %vm795, %v790, 0.0
    %800 = vrot.lane.b32.xlu0 %v796, 17
    %v801 = vpop.permute.xlu0 %800
    %802 = vrot.lane.b32.xlu0 %v797, 17
    %v803 = vpop.permute.xlu0 %802
    %804 = vrot.lane.b32.xlu0 %v798, 17
    %v805 = vpop.permute.xlu0 %804
    %806 = vrot.lane.b32.xlu0 %v799, 17
    %v807 = vpop.permute.xlu0 %806
    %v808 = vsel %vm244, %v805, %v807
    %v809 = vsel %vm244, %v803, %v805
    %v810 = vsel %vm244, %v801, %v803
    %v811 = vsel %vm244, %v807, %v801
    %v812 = vmul.f32 %v811, %v256
    %v813 = vmul.f32 %v810, %v260
    %v814 = vmul.f32 %v809, %v264
    %v815 = vmul.f32 %v808, %v268
    %816 = vrot.lane.b32.xlu0 %v796, 16
    %v817 = vpop.permute.xlu0 %816
    %818 = vrot.lane.b32.xlu0 %v797, 16
    %v819 = vpop.permute.xlu0 %818
    %820 = vrot.lane.b32.xlu0 %v798, 16
    %v821 = vpop.permute.xlu0 %820
    %822 = vrot.lane.b32.xlu0 %v799, 16
    %v823 = vpop.permute.xlu0 %822
    %v824 = vsel %vm293, %v821, %v823
    %v825 = vsel %vm293, %v819, %v821
    %v826 = vsel %vm293, %v817, %v819
    %v827 = vsel %vm293, %v823, %v817
    %v828 = vmul.f32 %v827, %v305
    %v829 = vmul.f32 %v826, %v309
    %v830 = vmul.f32 %v825, %v313
    %v831 = vmul.f32 %v824, %v317
    %832 = vrot.lane.b32.xlu0 %v796, 15
    %v833 = vpop.permute.xlu0 %832
    %834 = vrot.lane.b32.xlu0 %v797, 15
    %v835 = vpop.permute.xlu0 %834
    %836 = vrot.lane.b32.xlu0 %v798, 15
    %v837 = vpop.permute.xlu0 %836
    %838 = vrot.lane.b32.xlu0 %v799, 15
    %v839 = vpop.permute.xlu0 %838
    %v840 = vsel %vm342, %v837, %v839
    %v841 = vsel %vm342, %v835, %v837
    %v842 = vsel %vm342, %v833, %v835
    %v843 = vsel %vm342, %v839, %v833
    %v844 = vmul.f32 %v843, %v354
    %v845 = vmul.f32 %v842, %v358
    %v846 = vmul.f32 %v841, %v362
    %v847 = vmul.f32 %v840, %v366
    %848 = vrot.lane.b32.xlu0 %v796, 1
    %v849 = vpop.permute.xlu0 %848
    %850 = vrot.lane.b32.xlu0 %v797, 1
    %v851 = vpop.permute.xlu0 %850
    %852 = vrot.lane.b32.xlu0 %v798, 1
    %v853 = vpop.permute.xlu0 %852
    %854 = vrot.lane.b32.xlu0 %v799, 1
    %v855 = vpop.permute.xlu0 %854
    %v856 = vsel %vm391, %v853, %v855
    %v857 = vsel %vm391, %v851, %v853
    %v858 = vsel %vm391, %v849, %v851
    %v859 = vsel %vm391, %v855, %v849
    %v860 = vmul.f32 %v859, %v403
    %v861 = vmul.f32 %v858, %v407
    %v862 = vmul.f32 %v857, %v411
    %v863 = vmul.f32 %v856, %v415
    %v864 = vmul.f32 %v796, %v427
    %v865 = vmul.f32 %v797, %v431
    %v866 = vmul.f32 %v798, %v435
    %v867 = vmul.f32 %v799, %v439
    %868 = vrot.lane.b32.xlu0 %v796, 127
    %v869 = vpop.permute.xlu0 %868
    %870 = vrot.lane.b32.xlu0 %v797, 127
    %v871 = vpop.permute.xlu0 %870
    %872 = vrot.lane.b32.xlu0 %v798, 127
    %v873 = vpop.permute.xlu0 %872
    %874 = vrot.lane.b32.xlu0 %v799, 127
    %v875 = vpop.permute.xlu0 %874
    %v876 = vsel %vm464, %v873, %v875
    %v877 = vsel %vm464, %v871, %v873
    %v878 = vsel %vm464, %v869, %v871
    %v879 = vsel %vm464, %v875, %v869
    %v880 = vmul.f32 %v878, %v476
    %v881 = vmul.f32 %v877, %v480
    %v882 = vmul.f32 %v876, %v484
    %v883 = vmul.f32 %v879, %v488
    %884 = vrot.lane.b32.xlu0 %v796, 113
    %v885 = vpop.permute.xlu0 %884
    %886 = vrot.lane.b32.xlu0 %v797, 113
    %v887 = vpop.permute.xlu0 %886
    %888 = vrot.lane.b32.xlu0 %v798, 113
    %v889 = vpop.permute.xlu0 %888
    %890 = vrot.lane.b32.xlu0 %v799, 113
    %v891 = vpop.permute.xlu0 %890
    %v892 = vsel %vm513, %v889, %v891
    %v893 = vsel %vm513, %v887, %v889
    %v894 = vsel %vm513, %v885, %v887
    %v895 = vsel %vm513, %v891, %v885
    %v896 = vmul.f32 %v894, %v525
    %v897 = vmul.f32 %v893, %v529
    %v898 = vmul.f32 %v892, %v533
    %v899 = vmul.f32 %v895, %v537
    %900 = vrot.lane.b32.xlu0 %v796, 112
    %v901 = vpop.permute.xlu0 %900
    %902 = vrot.lane.b32.xlu0 %v797, 112
    %v903 = vpop.permute.xlu0 %902
    %904 = vrot.lane.b32.xlu0 %v798, 112
    %v905 = vpop.permute.xlu0 %904
    %906 = vrot.lane.b32.xlu0 %v799, 112
    %v907 = vpop.permute.xlu0 %906
    %v908 = vsel %vm562, %v905, %v907
    %v909 = vsel %vm562, %v903, %v905
    %v910 = vsel %vm562, %v901, %v903
    %v911 = vsel %vm562, %v907, %v901
    %v912 = vmul.f32 %v910, %v574
    %v913 = vmul.f32 %v909, %v578
    %v914 = vmul.f32 %v908, %v582
    %v915 = vmul.f32 %v911, %v586
    %916 = vrot.lane.b32.xlu0 %v796, 111
    %v917 = vpop.permute.xlu0 %916
    %918 = vrot.lane.b32.xlu0 %v797, 111
    %v919 = vpop.permute.xlu0 %918
    %920 = vrot.lane.b32.xlu0 %v798, 111
    %v921 = vpop.permute.xlu0 %920
    %922 = vrot.lane.b32.xlu0 %v799, 111
    %v923 = vpop.permute.xlu0 %922
    %v924 = vsel %vm611, %v921, %v923
    %v925 = vsel %vm611, %v919, %v921
    %v926 = vsel %vm611, %v917, %v919
    %v927 = vsel %vm611, %v923, %v917
    %v928 = vmul.f32 %v926, %v623
    %v929 = vmul.f32 %v925, %v627
    %v930 = vmul.f32 %v924, %v631
    %v931 = vmul.f32 %v927, %v635
    %v932 = vpack.c.bf16 %v828, %v812
    %v933 = vpack.c.bf16 %v829, %v813
    %v934 = vpack.c.bf16 %v830, %v814
    %v935 = vpack.c.bf16 %v831, %v815
    %v936 = vpack.c.bf16 %v860, %v844
    %v937 = vpack.c.bf16 %v861, %v845
    %v938 = vpack.c.bf16 %v862, %v846
    %v939 = vpack.c.bf16 %v863, %v847
    %v940 = vpack.c.bf16 %v880, %v864
    %v941 = vpack.c.bf16 %v881, %v865
    %v942 = vpack.c.bf16 %v882, %v866
    %v943 = vpack.c.bf16 %v883, %v867
    %v944 = vpack.c.bf16 %v912, %v896
    %v945 = vpack.c.bf16 %v913, %v897
    %v946 = vpack.c.bf16 %v914, %v898
    %v947 = vpack.c.bf16 %v915, %v899
    %v948 = vpack.c.bf16 %v928, %v928
    %v949 = vpack.c.bf16 %v929, %v929
    %v950 = vpack.c.bf16 %v930, %v930
    %v951 = vpack.c.bf16 %v931, %v931
    %v952 = vld [vmem:[%s6] sm:$0x3]
    %v953 = vld [vmem:[%s7] sm:$0xf]
    %955 = vset.pattern.permute.xlu0 0
    %956 = vperm.xlu0 %955, %v953
    %v957 = vpop.permute.xlu0 %956
    %vm959 = vcmask 588800
    %v961 = vsel %vm959, %v952, 0
    %v964 = vsel %vm795, %v948, 0
    %v967 = vsel %vm795, %v949, 0
    %v970 = vsel %vm795, %v950, 0
    %v973 = vsel %vm795, %v951, 0
    %975 = vmatprep.subr.bf16.mxu0 %v933
    %976 = vmatpush1.bf16.msra.mxu0 %v932
    %977 = vmatprep.subr.bf16.mxu0 %v937
    %978 = vmatpush1.bf16.msra.mxu0 %v936
    %979 = vmatprep.subr.bf16.mxu0 %v941
    %980 = vmatpush1.bf16.msra.mxu0 %v940
    %981 = vmatprep.subr.bf16.mxu0 %v945
    %982 = vmatpush1.bf16.msra.mxu0 %v944
    %983 = vmatprep.subr.bf16.mxu0 %v967
    %984 = vmatpush1.bf16.msra.mxu0 %v964
    %985 = vmatprep.subr.bf16.mxu0 0
    %986 = vmatpush1.bf16.msra.mxu0 0
    %987 = vmatprep.subr.bf16.mxu0 0
    %988 = vmatpush1.bf16.msra.mxu0 0
    %989 = vmatprep.subr.bf16.mxu0 0
    %990 = vmatpush1.bf16.msra.mxu0 0
    %991 = vmatprep.subr.bf16.mxu0 0
    %992 = vmatpush1.bf16.msra.mxu0 0
    %993 = vmatprep.subr.bf16.mxu0 0
    %994 = vmatpush1.bf16.msra.mxu0 0
    %995 = vmatprep.subr.bf16.mxu0 0
    %996 = vmatpush1.bf16.msra.mxu0 0
    %997 = vmatprep.subr.bf16.mxu0 0
    %998 = vmatpush1.bf16.msra.mxu0 0
    %999 = vmatprep.subr.bf16.mxu0 0
    %1000 = vmatpush1.bf16.msra.mxu0 0
    %1001 = vmatprep.subr.bf16.mxu0 0
    %1002 = vmatpush1.bf16.msra.mxu0 0
    %1003 = vmatprep.subr.bf16.mxu0 0
    %1004 = vmatpush1.bf16.msra.mxu0 0
    %1005 = vmatprep.subr.bf16.mxu0 0
    %1006 = vmatpush1.bf16.msra.mxu0 0
    %1007 = vmatprep.mubr.bf16.mxu0 0
    %1008 = vmatmul.mubr.bf16.gmra.mrb[0].mxu0 %v961
    %v1009 = vpop.f32.mrb[0].mxu0
    %v1010 = vadd.f32 %v957, %v1009
    %v1011 = vpop.f32.mrb[0].mxu0
    %v1012 = vadd.f32 %v957, %v1011
    %v1013 = vpop.f32.mrb[0].mxu0
    %v1014 = vpop.f32.mrb[0].mxu0
    %1015 = vdwg.mxu0
    %1016 = vmatprep.subr.bf16.mxu0 %v935
    %1017 = vmatpush1.bf16.msra.mxu0 %v934
    %1018 = vmatprep.subr.bf16.mxu0 %v939
    %1019 = vmatpush1.bf16.msra.mxu0 %v938
    %1020 = vmatprep.subr.bf16.mxu0 %v943
    %1021 = vmatpush1.bf16.msra.mxu0 %v942
    %1022 = vmatprep.subr.bf16.mxu0 %v947
    %1023 = vmatpush1.bf16.msra.mxu0 %v946
    %1024 = vmatprep.subr.bf16.mxu0 %v973
    %1025 = vmatpush1.bf16.msra.mxu0 %v970
    %1026 = vmatprep.subr.bf16.mxu0 0
    %1027 = vmatpush1.bf16.msra.mxu0 0
    %1028 = vmatprep.subr.bf16.mxu0 0
    %1029 = vmatpush1.bf16.msra.mxu0 0
    %1030 = vmatprep.subr.bf16.mxu0 0
    %1031 = vmatpush1.bf16.msra.mxu0 0
    %1032 = vmatprep.subr.bf16.mxu0 0
    %1033 = vmatpush1.bf16.msra.mxu0 0
    %1034 = vmatprep.subr.bf16.mxu0 0
    %1035 = vmatpush1.bf16.msra.mxu0 0
    %1036 = vmatprep.subr.bf16.mxu0 0
    %1037 = vmatpush1.bf16.msra.mxu0 0
    %1038 = vmatprep.subr.bf16.mxu0 0
    %1039 = vmatpush1.bf16.msra.mxu0 0
    %1040 = vmatprep.subr.bf16.mxu0 0
    %1041 = vmatpush1.bf16.msra.mxu0 0
    %1042 = vmatprep.subr.bf16.mxu0 0
    %1043 = vmatpush1.bf16.msra.mxu0 0
    %1044 = vmatprep.subr.bf16.mxu0 0
    %1045 = vmatpush1.bf16.msra.mxu0 0
    %1046 = vmatprep.subr.bf16.mxu0 0
    %1047 = vmatpush1.bf16.msra.mxu0 0
    %1048 = vmatprep.mubr.bf16.mxu0 0
    %1049 = vmatmul.mubr.bf16.gmra.mrb[0].mxu0 %v961
    %v1050 = vpop.f32.mrb[0].mxu0
    %v1051 = vadd.f32 %v957, %v1050
    %v1052 = vpop.f32.mrb[0].mxu0
    %v1053 = vadd.f32 %v957, %v1052
    %v1054 = vpop.f32.mrb[0].mxu0
    %v1055 = vpop.f32.mrb[0].mxu0
    %1056 = vdwg.mxu0
    %v1057 = vmax.f32 %v1010, 0.0
    %v1058 = vmax.f32 %v1012, 0.0
    %v1059 = vmax.f32 %v1051, 0.0
    %v1060 = vmax.f32 %v1053, 0.0
    %v1065 = vrot.slane %v1057, 4
    %v1066 = vrot.slane %v1058, 4
    %v1067 = vrot.slane %v1059, 4
    %v1068 = vrot.slane %v1060, 4
    %v1073 = vsel %vm795, %v779, %v1065
    %v1074 = vsel %vm795, %v780, %v1066
    %v1075 = vsel %vm795, %v781, %v1067
    %v1076 = vsel %vm795, %v782, %v1068
    %1077 = vst [vmem:[#allocation7 + $0x40] sm:$0xff] %v1073
    %1078 = vst [vmem:[#allocation7 + $0x48] sm:$0xff] %v1074
    %1079 = vst [vmem:[%s84 + $0x40] sm:$0xff] %v1075
    %1080 = vst [vmem:[%s84 + $0x48] sm:$0xff] %v1076
    // Predicated region
    $region42: #{tpu_custom_call.1} parent=1 // pred_check
      _
    $region43: #{tpu_custom_call.1} parent=1 // pred_check_branch
      %1082 = sbr.rel (0) target = $region45
    $region44: #{tpu_custom_call.1} parent=1 // pred_region
      %s1084 = ssub.s32 2560, 2560
      %1085 = vsyncadd [#allocation4], %s1084
      %s1086 = sshll.u32 [#allocation7], 4
      %s1087 = int_to_ptr.vmem [resolvable:$true] %s1086
      %1092 = dma.vmem_to_hbm [thread:$0]  %s1087, 2560, %s8, [#allocation4], 256, 256, 16
    $region45: #{tpu_custom_call.1} parent=1 // pred_fallthru
      _
    // Predicated region
    $region46: #{tpu_custom_call.1} parent=1 // pred_check
      _
    $region47: #{tpu_custom_call.1} parent=1 // pred_check_branch
      %1094 = sbr.rel (0) target = $region49
    $region48: #{tpu_custom_call.1} parent=1 // pred_region
      %1095 = dma.done [#allocation4], 2560
    $region49: #{tpu_custom_call.1} parent=1 // pred_fallthru
      _
    %1096 = vsyncpa [#allocation3], 1
    %1097 = vsyncpa [#allocation6], 1
    %1098 = vsyncpa [#allocation4], 1

</llo_original>
